<compile_context>
chip_gen: v7x
topology: tpu7x:2x2x1
jax: 0.10.0
libtpu: 0.0.40
codegen_flags: <defaults>
</compile_context>

<pallas_src>
import functools

import jax
import jax.numpy as jnp
from jax.experimental import pallas as pl
from jax.experimental.pallas import tpu as pltpu


_LANE = 128
_SUBLANE = 8
# Scoped-VMEM limit requested from Mosaic (safe on v5e/v6e 128 MiB phys and
# v7x 64 MiB phys).
_VMEM_LIMIT_BYTES = 32 << 20
# Conservative budget used by the tile heuristic (headroom below the limit).
_VMEM_BUDGET_BYTES = 16 << 20
# Below this many batch rows a single fused XLA dot+add beats pallas_call
# fixed overhead; the kernel only pays off for large B.
_MIN_PALLAS_ROWS = 1024


def _round_up(x, m):
    return ((x + m - 1) // m) * m


def fold_coral_params(w1, b1, w2, b2):
    """One-time (init-time) folding of the two affine stages.

    (x @ w1 + b1) @ w2 + b2  ==  x @ (w1 @ w2) + (b1 @ w2 + b2)
    Exact only because there is no nonlinearity between the stages (only
    valid while the prompt_model stand-in is purely linear).

    The folded weight's output dim is lane-padded (multiple of 128) so the
    in-kernel matmul is MXU/lane friendly; this padding lives with the params
    and costs nothing per forward call.

    Returns (w_pad [H, cout_pad] f32, b_fold [1, C-1] f32, C-1).
    """
    H = w1.shape[0]
    cm1 = w2.shape[1]
    w_fold = jnp.dot(w1, w2, preferred_element_type=jnp.float32)          # [H, C-1]
    b_fold = jnp.dot(b1, w2, preferred_element_type=jnp.float32) + b2     # [C-1]
    cout_pad = _round_up(max(cm1, 1), _LANE)
    w_pad = jnp.zeros((H, cout_pad), jnp.float32).at[:, :cm1].set(w_fold)
    return w_pad, b_fold.reshape(1, cm1).astype(jnp.float32), cm1


def _choose_tile_b(B, H, cout_pad, cm1, bytes_per_elem=4):
    """Pick a batch tile so the pipeline fits the VMEM budget on all chips."""
    # Resident params: BlockSpec double-buffers them by default.
    resident = 2 * (H * cout_pad + cm1) * bytes_per_elem
    avail = max(_VMEM_BUDGET_BYTES - resident, 1 << 20)
    # Double-buffered x tile and out tile, per batch row.
    per_row = 2 * (H + cm1) * bytes_per_elem
    t = (avail // per_row) // _SUBLANE * _SUBLANE
    t = max(_SUBLANE, min(t, 8192))
    # Keep at least 2 grid steps once B is big enough, so v7x's second
    # TensorCore gets work (no-op on single-TC v5e/v6e).
    if B > 2 * _SUBLANE:
        t = min(t, _round_up(pl.cdiv(B, 2), _SUBLANE))
    # Never tile coarser than the (sublane-aligned) batch itself.
    return min(t, _round_up(B, _SUBLANE))


def _coral_fused_kernel(x_ref, w_ref, b_ref, out_ref, *, n_valid_cols):
    # Fused affine map on a batch tile.  The dot runs against the lane-padded
    # weight ([H, cout_pad]); only the real columns are stored (true last dim
    # on the output -> no HBM write amplification, no post-kernel slice).
    acc = jnp.dot(x_ref[...], w_ref[...], preferred_element_type=jnp.float32)
    out_ref[...] = (acc[:, :n_valid_cols] + b_ref[...]).astype(out_ref.dtype)


def coral_prompt_model_with_linear(x, w_pad, b_fold, n_classes_m1,
                                   *, use_pallas=None):
    """Forward pass of CORALPromptModelWithLinear on pre-folded params.

    x      : [B, H] float32 input features
    w_pad  : [H, cout_pad] folded + lane-padded weight (from fold_coral_params)
    b_fold : [1, C-1] folded bias
    returns [B, C-1] float32 logits
    """
    B, H = x.shape
    cm1 = n_classes_m1
    if use_pallas is None:
        use_pallas = B >= _MIN_PALLAS_ROWS

    if not use_pallas:
        # Tiny batches: one fused XLA dot+add is strictly faster than the
        # pallas_call fixed overhead.
        return (jnp.dot(x, w_pad[:, :cm1], preferred_element_type=jnp.float32)
                + b_fold).astype(jnp.float32)

    cout_pad = w_pad.shape[1]
    tile_b = _choose_tile_b(B, H, cout_pad, cm1)
    grid = (pl.cdiv(B, tile_b),)  # ragged last block handled by Pallas masking

    kernel = functools.partial(_coral_fused_kernel, n_valid_cols=cm1)
    out = pl.pallas_call(
        kernel,
        out_shape=jax.ShapeDtypeStruct((B, cm1), jnp.float32),
        grid=grid,
        in_specs=[
            pl.BlockSpec((tile_b, H), lambda i: (i, 0)),       # x tile (pipelined)
            pl.BlockSpec((H, cout_pad), lambda i: (0, 0)),     # folded weight (resident)
            pl.BlockSpec((1, cm1), lambda i: (0, 0)),          # folded bias (resident)
        ],
        out_specs=pl.BlockSpec((tile_b, cm1), lambda i: (i, 0)),
        compiler_params=pltpu.CompilerParams(
            # Batch axis is data-parallel: lets v7x shard it across both TCs.
            dimension_semantics=("parallel",),
            vmem_limit_bytes=_VMEM_LIMIT_BYTES,
        ),
    )(x, w_pad, b_fold)
    return out


if __name__ == "__main__":
    # Small shapes consistent with the forward pass:
    #   batch=8, hidden=32 (prompt_model input features),
    #   num_classes=4 -> CORAL head outputs num_classes-1 = 3 logits.
    B, H, NUM_CLASSES = 8, 32, 4

    key = jax.random.PRNGKey(0)
    k_x, k_w1, k_b1, k_w2, k_b2 = jax.random.split(key, 5)

    x = jax.random.normal(k_x, (B, H), dtype=jnp.float32)

    # Synthetic prompt_model parameters (Linear H -> NUM_CLASSES), stored [in, out].
    w1 = jax.random.normal(k_w1, (H, NUM_CLASSES), dtype=jnp.float32) * 0.05
    b1 = jax.random.normal(k_b1, (NUM_CLASSES,), dtype=jnp.float32) * 0.05

    # CORAL head: nn.Linear(num_classes, num_classes - 1), stored [in, out]
    # (the transpose of PyTorch's [out, in] weight).
    w2 = jax.random.normal(k_w2, (NUM_CLASSES, NUM_CLASSES - 1), dtype=jnp.float32) * 0.1
    b2 = jax.random.normal(k_b2, (NUM_CLASSES - 1,), dtype=jnp.float32) * 0.1

    # --- init-time folding (done once, not per forward call) ---
    w_pad, b_fold, cm1 = fold_coral_params(w1, b1, w2, b2)
    w_pad, b_fold = jax.block_until_ready((w_pad, b_fold))

    fwd = jax.jit(functools.partial(coral_prompt_model_with_linear,
                                    n_classes_m1=cm1, use_pallas=True))

    out = jax.block_until_ready(fwd(x, w_pad, b_fold))

    # Reference check in plain JAX (same math as the PyTorch forward).
    ref = (x @ w1 + b1[None, :]) @ w2 + b2[None, :]
    assert out.shape == (B, NUM_CLASSES - 1)
    assert jnp.allclose(out, ref, atol=1e-5, rtol=1e-5)

    # Also exercise a ragged batch (B not a multiple of the tile) to confirm
    # the cdiv grid + masked tail-block writes are correct.
    B2 = 20
    x2 = jax.random.normal(jax.random.PRNGKey(1), (B2, H), dtype=jnp.float32)
    out2 = jax.block_until_ready(
        coral_prompt_model_with_linear(x2, w_pad, b_fold, cm1, use_pallas=True))
    ref2 = (x2 @ w1 + b1[None, :]) @ w2 + b2[None, :]
    assert out2.shape == (B2, NUM_CLASSES - 1)
    assert jnp.allclose(out2, ref2, atol=1e-5, rtol=1e-5)

    print("KERNEL_OK")
</pallas_src>

<mosaic_0001>
module attributes {stable_mosaic.version = 11 : i64} {
  func.func @_coral_fused_kernel(%arg0: i32, %arg1: memref<8x32xf32, #tpu.memory_space<vmem>>, %arg2: memref<32x128xf32, #tpu.memory_space<vmem>>, %arg3: memref<1x3xf32, #tpu.memory_space<vmem>>, %arg4: memref<8x3xf32, #tpu.memory_space<vmem>>) attributes {dimension_semantics = [#tpu.dimension_semantics<parallel>], iteration_bounds = array<i64: 1>, scalar_prefetch = 0 : i64, scratch_operands = 0 : i64, tpu.core_type = #tpu.core_type<tc>, window_params = [{transform_indices = @transform_0, window_bounds = array<i64: 8, 32>}, {pipeline_mode = #tpu.pipeline_mode<synchronous>, transform_indices = @transform_1, window_bounds = array<i64: 32, 128>}, {pipeline_mode = #tpu.pipeline_mode<synchronous>, transform_indices = @transform_2, window_bounds = array<i64: 1, 3>}, {transform_indices = @transform_3, window_bounds = array<i64: 8, 3>}]} {
    %c0 = arith.constant 0 : index
    %c0_0 = arith.constant 0 : index
    %0 = vector.load %arg1[%c0, %c0_0] : memref<8x32xf32, #tpu.memory_space<vmem>>, vector<8x32xf32>
    %c0_1 = arith.constant 0 : index
    %c0_2 = arith.constant 0 : index
    %1 = vector.load %arg2[%c0_1, %c0_2] : memref<32x128xf32, #tpu.memory_space<vmem>>, vector<32x128xf32>
    %cst = arith.constant dense<0.000000e+00> : vector<8x128xf32>
    %2 = tpu.matmul %0, %1, %cst {dimension_numbers = #tpu.dot_dimension_numbers<[1], [0], [0], [1], [0, 0, 1, 1], [], []>} : vector<8x32xf32>, vector<32x128xf32>, vector<8x128xf32> -> vector<8x128xf32>
    %3 = vector.extract_strided_slice %2 {offsets = [0, 0], sizes = [8, 3], strides = [1, 1]} : vector<8x128xf32> to vector<8x3xf32>
    %c0_3 = arith.constant 0 : index
    %c0_4 = arith.constant 0 : index
    %4 = vector.load %arg3[%c0_3, %c0_4] : memref<1x3xf32, #tpu.memory_space<vmem>>, vector<1x3xf32>
    %5 = vector.broadcast %4 : vector<1x3xf32> to vector<8x3xf32>
    %6 = arith.addf %3, %5 : vector<8x3xf32>
    %c0_5 = arith.constant 0 : index
    %c0_6 = arith.constant 0 : index
    %7 = vector.load %arg4[%c0_5, %c0_6] : memref<8x3xf32, #tpu.memory_space<vmem>>, vector<8x3xf32>
    tpu.vector_store %arg4[%c0_5, %c0_6], %6 {strides = array<i32>} : memref<8x3xf32, #tpu.memory_space<vmem>>, vector<8x3xf32>,
    return
  }
  func.func @transform_0(%arg0: i32) -> (i32, i32) {
    %c0_i32 = arith.constant 0 : i32
    %c0_i32_0 = arith.constant 0 : i32
    return %arg0, %c0_i32 : i32, i32
  }
  func.func @transform_1(%arg0: i32) -> (i32, i32) {
    %c0_i32 = arith.constant 0 : i32
    %c0_i32_0 = arith.constant 0 : i32
    %c0_i32_1 = arith.constant 0 : i32
    return %c0_i32, %c0_i32_0 : i32, i32
  }
  func.func @transform_2(%arg0: i32) -> (i32, i32) {
    %c0_i32 = arith.constant 0 : i32
    %c0_i32_0 = arith.constant 0 : i32
    %c0_i32_1 = arith.constant 0 : i32
    return %c0_i32, %c0_i32_0 : i32, i32
  }
  func.func @transform_3(%arg0: i32) -> (i32, i32) {
    %c0_i32 = arith.constant 0 : i32
    %c0_i32_0 = arith.constant 0 : i32
    return %arg0, %c0_i32 : i32, i32
  }
}

</mosaic_0001>

<llo_original>
// kernel: coral_prompt_model_with_linear.1
$region0: #{coral_prompt_model_with_linear.1}
  #allocation0 [shape = 'u32[]', space=smem, size = 0x4, offset = 0x4, fixed_abs, tag = 'smem constant byte address 0x4 - core index']
  #allocation1 [shape = 'u32[144,128]{1,0:T(1,128)}', space=vmem, size = 0x12000, scoped, tag = 'internal scratch']
  %s0 = inlined_call_operand.hbm [shape: f32[8,32], index: 0, kind: input, shape index: {}]
  %s1 = inlined_call_operand.hbm [shape: f32[32,128], index: 1, kind: input, shape index: {}]
  %s2 = inlined_call_operand.vmem [shape: f32[1,3], index: 2, kind: input, shape index: {}]
  %s3 = inlined_call_operand.vmem [shape: f32[8,3], index: 3, kind: output, shape index: {}]
  %s4 = sld [smem:[#allocation0]]
  $region30: #{coral_prompt_model_with_linear.1} parent=0
    _
  %s6 = ssub.s32 1, %s4
  %s7 = scalar_select 0, %s6, %s4
  $region1: #{coral_prompt_model_with_linear.1} parent=0
    #allocation2 [shape = 'u8[4096]{0}', space=vmem, size = 0x1000, scoped, tag = 'input window, operand 0, single buffered']
    #allocation3 [shape = 's32[1]{0}', space=sflag, size = 0x4, scoped, tag = 'scoped memory for coral_prompt_model_with_linear.1']
    #allocation4 [shape = 'u8[16384]{0}', space=vmem, size = 0x4000, scoped, tag = 'input window, operand 1, single buffered']
    #allocation5 [shape = 's32[1]{0}', space=sflag, size = 0x4, scoped, tag = 'scoped memory for coral_prompt_model_with_linear.1']
    %8 = vsyncpa [#allocation3], 0
    %9 = vsyncpa [#allocation5], 0
    // Predicated region
    $region2: #{coral_prompt_model_with_linear.1} parent=1 // pred_check
      _
    $region3: #{coral_prompt_model_with_linear.1} parent=1 // pred_check_branch
      %11 = sbr.rel (0) target = $region5
    $region4: #{coral_prompt_model_with_linear.1} parent=1 // pred_region
      %s13 = ssub.s32 128, 128
      %14 = vsyncadd [#allocation3], %s13
      %s16 = sshll.u32 [#allocation2], 4
      %s17 = int_to_ptr.vmem [resolvable:$true] %s16
      %19 = dma.hbm_to_vmem [thread:$0]  %s0, 128, %s17, [#allocation3]
    $region5: #{coral_prompt_model_with_linear.1} parent=1 // pred_fallthru
      _
    // Predicated region
    $region6: #{coral_prompt_model_with_linear.1} parent=1 // pred_check
      _
    $region7: #{coral_prompt_model_with_linear.1} parent=1 // pred_check_branch
      %21 = sbr.rel (0) target = $region9
    $region8: #{coral_prompt_model_with_linear.1} parent=1 // pred_region
      %s23 = ssub.s32 512, 512
      %24 = vsyncadd [#allocation5], %s23
      %s25 = sshll.u32 [#allocation4], 4
      %s26 = int_to_ptr.vmem [resolvable:$true] %s25
      %31 = dma.hbm_to_vmem [thread:$0]  %s1, 512, %s26, [#allocation5], 128, 128, 8
    $region9: #{coral_prompt_model_with_linear.1} parent=1 // pred_fallthru
      _
    // Predicated region
    $region10: #{coral_prompt_model_with_linear.1} parent=1 // pred_check
      _
    $region11: #{coral_prompt_model_with_linear.1} parent=1 // pred_check_branch
      %33 = sbr.rel (0) target = $region13
    $region12: #{coral_prompt_model_with_linear.1} parent=1 // pred_region
      _
    $region13: #{coral_prompt_model_with_linear.1} parent=1 // pred_fallthru
      _
    // Predicated region
    $region14: #{coral_prompt_model_with_linear.1} parent=1 // pred_check
      _
    $region15: #{coral_prompt_model_with_linear.1} parent=1 // pred_check_branch
      %35 = sbr.rel (0) target = $region17
    $region16: #{coral_prompt_model_with_linear.1} parent=1 // pred_region
      %36 = dma.done [#allocation3], 128
    $region17: #{coral_prompt_model_with_linear.1} parent=1 // pred_fallthru
      _
    // Predicated region
    $region18: #{coral_prompt_model_with_linear.1} parent=1 // pred_check
      _
    $region19: #{coral_prompt_model_with_linear.1} parent=1 // pred_check_branch
      %38 = sbr.rel (0) target = $region21
    $region20: #{coral_prompt_model_with_linear.1} parent=1 // pred_region
      %39 = dma.done [#allocation5], 512
    $region21: #{coral_prompt_model_with_linear.1} parent=1 // pred_fallthru
      _
    %v40 = vld [vmem:[#allocation2] sm:$0xff]
    %v41 = vld [vmem:[#allocation4] sm:$0xff]
    %v42 = vld [vmem:[#allocation4 + $0x8] sm:$0xff]
    %v43 = vld [vmem:[#allocation4 + $0x10] sm:$0xff]
    %v44 = vld [vmem:[#allocation4 + $0x18] sm:$0xff]
    %vm45 = vcmask 261120
    %v47 = vsel %vm45, %v40, 0
    %49 = vmatprep.subr.mxu0 0.0
    %50 = vmatpush1.msra.mxu0 %v41
    %51 = vmatprep.subr.mxu0 0.0
    %52 = vmatpush1.msra.mxu0 %v42
    %53 = vmatprep.subr.mxu0 0.0
    %54 = vmatpush1.msra.mxu0 %v43
    %55 = vmatprep.subr.mxu0 0.0
    %56 = vmatpush1.msra.mxu0 %v44
    %57 = vmatprep.subr.mxu0 0.0
    %58 = vmatpush1.msra.mxu0 0.0
    %59 = vmatprep.subr.mxu0 0.0
    %60 = vmatpush1.msra.mxu0 0.0
    %61 = vmatprep.subr.mxu0 0.0
    %62 = vmatpush1.msra.mxu0 0.0
    %63 = vmatprep.subr.mxu0 0.0
    %64 = vmatpush1.msra.mxu0 0.0
    %65 = vmatprep.subr.mxu0 0.0
    %66 = vmatpush1.msra.mxu0 0.0
    %67 = vmatprep.subr.mxu0 0.0
    %68 = vmatpush1.msra.mxu0 0.0
    %69 = vmatprep.subr.mxu0 0.0
    %70 = vmatpush1.msra.mxu0 0.0
    %71 = vmatprep.subr.mxu0 0.0
    %72 = vmatpush1.msra.mxu0 0.0
    %73 = vmatprep.subr.mxu0 0.0
    %74 = vmatpush1.msra.mxu0 0.0
    %75 = vmatprep.subr.mxu0 0.0
    %76 = vmatpush1.msra.mxu0 0.0
    %77 = vmatprep.subr.mxu0 0.0
    %78 = vmatpush1.msra.mxu0 0.0
    %79 = vmatprep.subr.mxu0 0.0
    %80 = vmatpush1.msra.mxu0 0.0
    %81 = vmatprep.subr.mxu0 0.0
    %82 = vmatpush1.msra.mxu0 0.0
    %83 = vmatprep.subr.mxu0 0.0
    %84 = vmatpush1.msra.mxu0 0.0
    %85 = vmatprep.subr.mxu0 0.0
    %86 = vmatpush1.msra.mxu0 0.0
    %87 = vmatprep.subr.mxu0 0.0
    %88 = vmatpush1.msra.mxu0 0.0
    %89 = vmatprep.subr.mxu0 0.0
    %90 = vmatpush1.msra.mxu0 0.0
    %91 = vmatprep.subr.mxu0 0.0
    %92 = vmatpush1.msra.mxu0 0.0
    %93 = vmatprep.subr.mxu0 0.0
    %94 = vmatpush1.msra.mxu0 0.0
    %95 = vmatprep.subr.mxu0 0.0
    %96 = vmatpush1.msra.mxu0 0.0
    %97 = vmatprep.subr.mxu0 0.0
    %98 = vmatpush1.msra.mxu0 0.0
    %99 = vmatprep.subr.mxu0 0.0
    %100 = vmatpush1.msra.mxu0 0.0
    %101 = vmatprep.subr.mxu0 0.0
    %102 = vmatpush1.msra.mxu0 0.0
    %103 = vmatprep.subr.mxu0 0.0
    %104 = vmatpush1.msra.mxu0 0.0
    %105 = vmatprep.subr.mxu0 0.0
    %106 = vmatpush1.msra.mxu0 0.0
    %107 = vmatprep.subr.mxu0 0.0
    %108 = vmatpush1.msra.mxu0 0.0
    %109 = vmatprep.subr.mxu0 0.0
    %110 = vmatpush1.msra.mxu0 0.0
    %111 = vmatprep.subr.mxu0 0.0
    %112 = vmatpush1.msra.mxu0 0.0
    %113 = vmatprep.mubr.f32.mxu0 0.0
    %114 = vmatmul.mubr.f32.gmra.mrb[0].mxu0 %v47
    %v115 = vpop.f32.mrb[0].mxu0
    %v116 = vadd.f32 0.0, %v115
    %v117 = vpop.f32.mrb[0].mxu0
    %118 = vdwg.mxu0
    %v119 = vld [vmem:[%s2] sm:$0x1]
    %v121 = vlaneseq
    %v122 = vshrl.u32 %v121, 7
    %v123 = vsub.s32 0, %v122
    %v124 = vrot.slane %v119, %v123
    %v126 = vadd.f32 %v116, %v124
    %vm127 = vcmask 23552
    %128 = vst.msk [vmem:[%s3] sm:$0xff] %vm127, %v126
    // Predicated region
    $region22: #{coral_prompt_model_with_linear.1} parent=1 // pred_check
      _
    $region23: #{coral_prompt_model_with_linear.1} parent=1 // pred_check_branch
      %130 = sbr.rel (0) target = $region25
    $region24: #{coral_prompt_model_with_linear.1} parent=1 // pred_region
      _
    $region25: #{coral_prompt_model_with_linear.1} parent=1 // pred_fallthru
      _
    // Predicated region
    $region26: #{coral_prompt_model_with_linear.1} parent=1 // pred_check
      _
    $region27: #{coral_prompt_model_with_linear.1} parent=1 // pred_check_branch
      %132 = sbr.rel (0) target = $region29
    $region28: #{coral_prompt_model_with_linear.1} parent=1 // pred_region
      _
    $region29: #{coral_prompt_model_with_linear.1} parent=1 // pred_fallthru
      _
    %133 = vsyncpa [#allocation3], 1
    %134 = vsyncpa [#allocation5], 1

</llo_original>
